<compile_context>
chip_gen: v7x
topology: tpu7x:2x2x1
jax: 0.10.0
libtpu: 0.0.40
codegen_flags: <defaults>
</compile_context>

<pallas_src>
import functools

import jax
import jax.numpy as jnp
from jax.experimental import pallas as pl
from jax.experimental.pallas import tpu as pltpu

EPS = 1e-5  # PyTorch BatchNorm2d default eps
_VMEM_LIMIT = 32 * 1024 * 1024  # explicit scoped-VMEM budget


def _round_up(x, m):
    return (x + m - 1) // m * m


def _pick_tm(M, K, Cpad):
    """Largest row tile <=512 whose double-buffered working set fits the VMEM budget."""
    tm = min(512, _round_up(M, 8))
    while tm > 8:
        vmem = (2 * tm * K * 2          # patch tile bf16, double-buffered
                + 2 * K * Cpad * 2      # weight bf16 (conservatively x2)
                + 4 * tm * Cpad * 4     # y tile in + out, f32, double-buffered
                + 4 * 8 * Cpad * 4)     # stats tiles
        if vmem <= int(_VMEM_LIMIT * 0.9):
            break
        tm = max(8, tm // 2)
    return tm


# ----------------------------------------------------------------------------
# Kernel A: conv matmul tile + fused per-tile BN partial-stats epilogue
# ----------------------------------------------------------------------------
def _conv_stats_kernel(p_ref, w_ref, y_ref, s_ref):
    # p_ref: (TM, K) bf16 patches, w_ref: (K, Cpad) bf16
    # y_ref: (TM, Cpad) f32 conv output tile
    # s_ref: (1, 8, Cpad) f32 partial stats: row 0 = sum(y), row 1 = sum(y*y)
    y = jnp.dot(p_ref[...], w_ref[...], preferred_element_type=jnp.float32)
    y_ref[...] = y
    cpad = s_ref.shape[-1]
    s1 = jnp.sum(y, axis=0, keepdims=True)
    s2 = jnp.sum(y * y, axis=0, keepdims=True)
    row = jax.lax.broadcasted_iota(jnp.int32, (8, cpad), 0)
    s_ref[0] = jnp.where(row == 0, s1, 0.0) + jnp.where(row == 1, s2, 0.0)


def _conv_stats(patches, w_mat, tm):
    Mpad, K = patches.shape
    _, Cpad = w_mat.shape
    T = Mpad // tm
    return pl.pallas_call(
        _conv_stats_kernel,
        out_shape=(jax.ShapeDtypeStruct((Mpad, Cpad), jnp.float32),
                   jax.ShapeDtypeStruct((T, 8, Cpad), jnp.float32)),
        grid_spec=pltpu.PrefetchScalarGridSpec(
            num_scalar_prefetch=0,
            grid=(T,),
            in_specs=[
                pl.BlockSpec((tm, K), lambda i: (i, 0)),
                pl.BlockSpec((K, Cpad), lambda i: (0, 0)),
            ],
            out_specs=[
                pl.BlockSpec((tm, Cpad), lambda i: (i, 0)),
                pl.BlockSpec((1, 8, Cpad), lambda i: (i, 0, 0)),
            ],
        ),
        compiler_params=pltpu.CompilerParams(
            dimension_semantics=("parallel",),
            vmem_limit_bytes=_VMEM_LIMIT),
    )(patches, w_mat)


# ----------------------------------------------------------------------------
# Kernel B: fused BN finalize + normalize (in place, output aliased onto conv buffer)
#   scale = gamma * rsqrt(var + eps),  shift = -mean * scale,  out = y*scale + shift
# ----------------------------------------------------------------------------
def _normalize_kernel(s_ref, g_ref, y_ref, o_ref, *, m_count):
    T = s_ref.shape[0]
    if T <= 16:
        tot = s_ref[0]
        for t in range(1, T):           # static unroll over the (small) number of row tiles
            tot = tot + s_ref[t]
    else:
        tot = jnp.sum(s_ref[...], axis=0)
    inv_m = 1.0 / float(m_count)
    mean = tot[0:1, :] * inv_m
    var = tot[1:2, :] * inv_m - mean * mean   # biased variance (PyTorch BN normalization)
    scale = g_ref[...] * jax.lax.rsqrt(var + EPS)
    shift = -mean * scale
    o_ref[...] = y_ref[...] * scale + shift


def _normalize(stats, gamma_pad, y2d, tm, m_count):
    Mpad, Cpad = y2d.shape
    T = stats.shape[0]
    return pl.pallas_call(
        functools.partial(_normalize_kernel, m_count=m_count),
        out_shape=jax.ShapeDtypeStruct((Mpad, Cpad), jnp.float32),
        grid_spec=pltpu.PrefetchScalarGridSpec(
            num_scalar_prefetch=0,
            grid=(Mpad // tm,),
            in_specs=[
                pl.BlockSpec((T, 8, Cpad), lambda i: (0, 0, 0)),
                pl.BlockSpec((1, Cpad), lambda i: (0, 0)),
                pl.BlockSpec((tm, Cpad), lambda i: (i, 0)),
            ],
            out_specs=pl.BlockSpec((tm, Cpad), lambda i: (i, 0)),
        ),
        input_output_aliases={2: 0},   # normalize in place; conv buffer is donated
        compiler_params=pltpu.CompilerParams(
            dimension_semantics=("parallel",),
            vmem_limit_bytes=_VMEM_LIMIT),
    )(stats, gamma_pad, y2d)


# ----------------------------------------------------------------------------
# Glue: im2col (plain JAX) + forward
# ----------------------------------------------------------------------------
def _im2col(x_nchw, kh, kw, stride, padding, dilation):
    N, C, H, W = x_nchw.shape
    Hout = (H + 2 * padding - dilation * (kh - 1) - 1) // stride + 1
    Wout = (W + 2 * padding - dilation * (kw - 1) - 1) // stride + 1
    xp = jnp.pad(x_nchw, ((0, 0), (0, 0), (padding, padding), (padding, padding)))
    cols = []
    for i in range(kh):
        for j in range(kw):
            r0 = i * dilation
            c0 = j * dilation
            sl = xp[:, :,
                    r0:r0 + stride * (Hout - 1) + 1:stride,
                    c0:c0 + stride * (Wout - 1) + 1:stride]  # [N, C, Hout, Wout]
            cols.append(sl)
    p = jnp.stack(cols, axis=0).reshape(kh, kw, N, C, Hout, Wout)
    # -> [N, Hout, Wout, C, kh, kw] so patch vector order matches PyTorch OIHW weight flatten
    p = jnp.transpose(p, (2, 4, 5, 3, 0, 1))
    return p.reshape(N * Hout * Wout, C * kh * kw), Hout, Wout


@functools.partial(jax.jit, static_argnames=("padding", "stride", "dilation", "matmul_dtype"))
def conv_bn_scale4rec(x, weight, gamma, *, padding, stride, dilation=1,
                      matmul_dtype=jnp.bfloat16):
    """x: [N, Cin, H, W]; weight: [Cout, Cin, KH, KW]; gamma: [Cout]. Returns NCHW float32."""
    N = x.shape[0]
    Cout, _, kh, kw = weight.shape
    patches, Hout, Wout = _im2col(x, kh, kw, stride, padding, dilation)
    M, K = patches.shape

    Cpad = _round_up(Cout, 128)            # lane-dense output channels (unmasked vst)
    tm = _pick_tm(M, K, Cpad)              # large, VMEM-bounded, pipelined row tiles
    Mpad = _round_up(M, tm)                # zero row padding (contributes 0 to BN sums)

    patches = jnp.pad(patches, ((0, Mpad - M), (0, 0))).astype(matmul_dtype)
    w_mat = weight.reshape(Cout, -1).T     # [Cin*kh*kw, Cout]
    w_mat = jnp.pad(w_mat, ((0, 0), (0, Cpad - Cout))).astype(matmul_dtype)
    gamma_pad = jnp.pad(gamma.astype(jnp.float32), (0, Cpad - Cout)).reshape(1, Cpad)

    y2d, stats = _conv_stats(patches, w_mat, tm)        # conv matmul + fused partial BN stats
    o2d = _normalize(stats, gamma_pad, y2d, tm, M)      # fused finalize + y*scale + shift (in place)

    out = o2d[:M, :Cout].reshape(N, Hout, Wout, Cout)
    # NCHW for parity with the PyTorch module; NHWC consumers could skip this transpose.
    return jnp.transpose(out, (0, 3, 1, 2))


# ----------------------------------------------------------------------------
# References for verification
# ----------------------------------------------------------------------------
def _reference(x, weight, gamma, padding, stride, dilation, conv_dtype=None):
    if conv_dtype is not None:
        xc, wc = x.astype(conv_dtype), weight.astype(conv_dtype)
    else:
        xc, wc = x, weight
    y = jax.lax.conv_general_dilated(
        xc, wc, window_strides=(stride, stride),
        padding=[(padding, padding), (padding, padding)],
        rhs_dilation=(dilation, dilation),
        dimension_numbers=("NCHW", "OIHW", "NCHW"),
        preferred_element_type=jnp.float32)
    mean = y.mean(axis=(0, 2, 3), keepdims=True)
    var = ((y - mean) ** 2).mean(axis=(0, 2, 3), keepdims=True)
    return (y - mean) / jnp.sqrt(var + EPS) * gamma[None, :, None, None]


if __name__ == "__main__":
    # Small shapes consistent with the module: batch=2, in=4, out=8, 16x16, k=3, pad=1, stride=1
    N, Cin, Cout, H, W = 2, 4, 8, 16, 16
    KH = KW = 3
    padding, stride, dilation = 1, 1, 1

    key = jax.random.PRNGKey(0)
    kx, kw_, kg, kb = jax.random.split(key, 4)
    x = jax.random.normal(kx, (N, Cin, H, W), dtype=jnp.float32)
    weight = jax.random.normal(kw_, (Cout, Cin, KH, KW), dtype=jnp.float32) * 0.1
    gamma = jax.random.uniform(kg, (Cout,), minval=0.5, maxval=1.5, dtype=jnp.float32)
    beta = jax.random.normal(kb, (Cout,), dtype=jnp.float32)
    # TODO(synk): `beta` is a parameter of the PyTorch module but never used in forward(); kept for parity only.

    out = conv_bn_scale4rec(x, weight, gamma, padding=padding, stride=stride, dilation=dilation)
    out = jax.block_until_ready(out)
    assert out.shape == (N, Cout, H, W)

    # bf16-operand-consistent reference: must match tightly (same math, f32 accumulation).
    ref_bf16 = _reference(x, weight, gamma, padding, stride, dilation, conv_dtype=jnp.bfloat16)
    err_bf16 = float(jnp.max(jnp.abs(out - ref_bf16)))
    assert err_bf16 < 2e-3, f"bf16-consistent reference mismatch: {err_bf16}"

    # Pure-f32 reference: small deviation expected from bf16 matmul operand quantization.
    ref_f32 = _reference(x, weight, gamma, padding, stride, dilation)
    err_f32 = float(jnp.max(jnp.abs(out - ref_f32)))
    assert err_f32 < 6e-2, f"f32 reference mismatch: {err_f32}"

    print("KERNEL_OK")
</pallas_src>

<mosaic_0001>
module attributes {stable_mosaic.version = 11 : i64} {
  func.func @_normalize_kernel(%arg0: i32, %arg1: memref<1x8x128xf32, #tpu.memory_space<vmem>>, %arg2: memref<1x128xf32, #tpu.memory_space<vmem>>, %arg3: memref<512x128xf32, #tpu.memory_space<vmem>>, %arg4: memref<512x128xf32, #tpu.memory_space<vmem>>) attributes {dimension_semantics = [#tpu.dimension_semantics<parallel>], iteration_bounds = array<i64: 1>, scalar_prefetch = 0 : i64, scratch_operands = 0 : i64, tpu.core_type = #tpu.core_type<tc>, window_params = [{pipeline_mode = #tpu.pipeline_mode<synchronous>, transform_indices = @transform_0, window_bounds = array<i64: 1, 8, 128>}, {pipeline_mode = #tpu.pipeline_mode<synchronous>, transform_indices = @transform_1, window_bounds = array<i64: 1, 128>}, {transform_indices = @transform_2, window_bounds = array<i64: 512, 128>}, {transform_indices = @transform_3, window_bounds = array<i64: 512, 128>}]} {
    %c0 = arith.constant 0 : index
    %c0_0 = arith.constant 0 : index
    %c0_1 = arith.constant 0 : index
    %0 = vector.load %arg1[%c0, %c0_0, %c0_1] : memref<1x8x128xf32, #tpu.memory_space<vmem>>, vector<1x8x128xf32>
    %1 = vector.shape_cast %0 : vector<1x8x128xf32> to vector<8x128xf32>
    %2 = vector.extract_strided_slice %1 {offsets = [0, 0], sizes = [1, 128], strides = [1, 1]} : vector<8x128xf32> to vector<1x128xf32>
    %cst = arith.constant 0.001953125 : f32
    %3 = vector.broadcast %cst : f32 to vector<1x128xf32>
    %4 = arith.mulf %2, %3 : vector<1x128xf32>
    %5 = vector.extract_strided_slice %1 {offsets = [1, 0], sizes = [1, 128], strides = [1, 1]} : vector<8x128xf32> to vector<1x128xf32>
    %cst_2 = arith.constant 0.001953125 : f32
    %6 = vector.broadcast %cst_2 : f32 to vector<1x128xf32>
    %7 = arith.mulf %5, %6 : vector<1x128xf32>
    %8 = arith.mulf %4, %4 : vector<1x128xf32>
    %9 = arith.subf %7, %8 : vector<1x128xf32>
    %c0_3 = arith.constant 0 : index
    %c0_4 = arith.constant 0 : index
    %10 = vector.load %arg2[%c0_3, %c0_4] : memref<1x128xf32, #tpu.memory_space<vmem>>, vector<1x128xf32>
    %cst_5 = arith.constant 9.99999974E-6 : f32
    %11 = vector.broadcast %cst_5 : f32 to vector<1x128xf32>
    %12 = arith.addf %9, %11 : vector<1x128xf32>
    %13 = math.rsqrt %12 : vector<1x128xf32>
    %14 = arith.mulf %10, %13 : vector<1x128xf32>
    %cst_6 = arith.constant 0.000000e+00 : f32
    %15 = vector.broadcast %cst_6 : f32 to vector<1x128xf32>
    %16 = arith.subf %15, %4 : vector<1x128xf32>
    %17 = arith.mulf %16, %14 : vector<1x128xf32>
    %c0_7 = arith.constant 0 : index
    %c0_8 = arith.constant 0 : index
    %18 = vector.load %arg3[%c0_7, %c0_8] : memref<512x128xf32, #tpu.memory_space<vmem>>, vector<512x128xf32>
    %19 = vector.broadcast %14 : vector<1x128xf32> to vector<512x128xf32>
    %20 = arith.mulf %18, %19 : vector<512x128xf32>
    %21 = vector.broadcast %17 : vector<1x128xf32> to vector<512x128xf32>
    %22 = arith.addf %20, %21 : vector<512x128xf32>
    %c0_9 = arith.constant 0 : index
    %c0_10 = arith.constant 0 : index
    %23 = vector.load %arg4[%c0_9, %c0_10] : memref<512x128xf32, #tpu.memory_space<vmem>>, vector<512x128xf32>
    tpu.vector_store %arg4[%c0_9, %c0_10], %22 {strides = array<i32>} : memref<512x128xf32, #tpu.memory_space<vmem>>, vector<512x128xf32>,
    return
  }
  func.func @transform_0(%arg0: i32) -> (i32, i32, i32) {
    %c0_i32 = arith.constant 0 : i32
    %c0_i32_0 = arith.constant 0 : i32
    %c0_i32_1 = arith.constant 0 : i32
    %c0_i32_2 = arith.constant 0 : i32
    return %c0_i32, %c0_i32_0, %c0_i32_1 : i32, i32, i32
  }
  func.func @transform_1(%arg0: i32) -> (i32, i32) {
    %c0_i32 = arith.constant 0 : i32
    %c0_i32_0 = arith.constant 0 : i32
    %c0_i32_1 = arith.constant 0 : i32
    return %c0_i32, %c0_i32_0 : i32, i32
  }
  func.func @transform_2(%arg0: i32) -> (i32, i32) {
    %c0_i32 = arith.constant 0 : i32
    %c0_i32_0 = arith.constant 0 : i32
    return %arg0, %c0_i32 : i32, i32
  }
  func.func @transform_3(%arg0: i32) -> (i32, i32) {
    %c0_i32 = arith.constant 0 : i32
    %c0_i32_0 = arith.constant 0 : i32
    return %arg0, %c0_i32 : i32, i32
  }
}

module attributes {stable_mosaic.version = 11 : i64} {
  func.func @_conv_stats_kernel(%arg0: i32, %arg1: memref<512x36xbf16, #tpu.memory_space<vmem>>, %arg2: memref<36x128xbf16, #tpu.memory_space<vmem>>, %arg3: memref<512x128xf32, #tpu.memory_space<vmem>>, %arg4: memref<1x8x128xf32, #tpu.memory_space<vmem>>) attributes {dimension_semantics = [#tpu.dimension_semantics<parallel>], iteration_bounds = array<i64: 1>, scalar_prefetch = 0 : i64, scratch_operands = 0 : i64, tpu.core_type = #tpu.core_type<tc>, window_params = [{transform_indices = @transform_0, window_bounds = array<i64: 512, 36>}, {pipeline_mode = #tpu.pipeline_mode<synchronous>, transform_indices = @transform_1, window_bounds = array<i64: 36, 128>}, {transform_indices = @transform_2, window_bounds = array<i64: 512, 128>}, {transform_indices = @transform_3, window_bounds = array<i64: 1, 8, 128>}]} {
    %c0 = arith.constant 0 : index
    %c0_0 = arith.constant 0 : index
    %0 = vector.load %arg1[%c0, %c0_0] : memref<512x36xbf16, #tpu.memory_space<vmem>>, vector<512x36xbf16>
    %c0_1 = arith.constant 0 : index
    %c0_2 = arith.constant 0 : index
    %1 = vector.load %arg2[%c0_1, %c0_2] : memref<36x128xbf16, #tpu.memory_space<vmem>>, vector<36x128xbf16>
    %cst = arith.constant dense<0.000000e+00> : vector<512x128xf32>
    %2 = tpu.matmul %0, %1, %cst {dimension_numbers = #tpu.dot_dimension_numbers<[1], [0], [0], [1], [0, 0, 1, 1], [], []>} : vector<512x36xbf16>, vector<36x128xbf16>, vector<512x128xf32> -> vector<512x128xf32>
    %c0_3 = arith.constant 0 : index
    %c0_4 = arith.constant 0 : index
    %3 = vector.load %arg3[%c0_3, %c0_4] : memref<512x128xf32, #tpu.memory_space<vmem>>, vector<512x128xf32>
    tpu.vector_store %arg3[%c0_3, %c0_4], %2 {strides = array<i32>} : memref<512x128xf32, #tpu.memory_space<vmem>>, vector<512x128xf32>,
    %cst_5 = arith.constant dense<0.000000e+00> : vector<128xf32>
    %4 = vector.multi_reduction <add>, %2, %cst_5 [0] : vector<512x128xf32> to vector<128xf32>
    %5 = vector.shape_cast %4 : vector<128xf32> to vector<1x128xf32>
    %6 = arith.mulf %2, %2 : vector<512x128xf32>
    %cst_6 = arith.constant dense<0.000000e+00> : vector<128xf32>
    %7 = vector.multi_reduction <add>, %6, %cst_6 [0] : vector<512x128xf32> to vector<128xf32>
    %8 = vector.shape_cast %7 : vector<128xf32> to vector<1x128xf32>
    %9 = tpu.iota {dimensions = array<i32: 0>} : vector<8x128xi32>
    %c0_i32 = arith.constant 0 : i32
    %10 = vector.broadcast %c0_i32 : i32 to vector<8x128xi32>
    %11 = arith.cmpi eq, %9, %10 : vector<8x128xi32>
    %cst_7 = arith.constant 0.000000e+00 : f32
    %12 = vector.shape_cast %5 : vector<1x128xf32> to vector<1x128xf32>
    %13 = vector.broadcast %12 : vector<1x128xf32> to vector<8x128xf32>
    %14 = vector.broadcast %cst_7 : f32 to vector<8x128xf32>
    %15 = arith.select %11, %13, %14 : vector<8x128xi1>, vector<8x128xf32>
    %c1_i32 = arith.constant 1 : i32
    %16 = vector.broadcast %c1_i32 : i32 to vector<8x128xi32>
    %17 = arith.cmpi eq, %9, %16 : vector<8x128xi32>
    %cst_8 = arith.constant 0.000000e+00 : f32
    %18 = vector.shape_cast %8 : vector<1x128xf32> to vector<1x128xf32>
    %19 = vector.broadcast %18 : vector<1x128xf32> to vector<8x128xf32>
    %20 = vector.broadcast %cst_8 : f32 to vector<8x128xf32>
    %21 = arith.select %17, %19, %20 : vector<8x128xi1>, vector<8x128xf32>
    %22 = arith.addf %15, %21 : vector<8x128xf32>
    %c0_9 = arith.constant 0 : index
    %c0_10 = arith.constant 0 : index
    %c0_11 = arith.constant 0 : index
    %23 = vector.load %arg4[%c0_9, %c0_10, %c0_11] : memref<1x8x128xf32, #tpu.memory_space<vmem>>, vector<1x8x128xf32>
    %24 = vector.shape_cast %23 : vector<1x8x128xf32> to vector<8x128xf32>
    %25 = vector.shape_cast %22 : vector<8x128xf32> to vector<1x8x128xf32>
    tpu.vector_store %arg4[%c0_9, %c0_10, %c0_11], %25 {strides = array<i32>} : memref<1x8x128xf32, #tpu.memory_space<vmem>>, vector<1x8x128xf32>,
    return
  }
  func.func @transform_0(%arg0: i32) -> (i32, i32) {
    %c0_i32 = arith.constant 0 : i32
    %c0_i32_0 = arith.constant 0 : i32
    return %arg0, %c0_i32 : i32, i32
  }
  func.func @transform_1(%arg0: i32) -> (i32, i32) {
    %c0_i32 = arith.constant 0 : i32
    %c0_i32_0 = arith.constant 0 : i32
    %c0_i32_1 = arith.constant 0 : i32
    return %c0_i32, %c0_i32_0 : i32, i32
  }
  func.func @transform_2(%arg0: i32) -> (i32, i32) {
    %c0_i32 = arith.constant 0 : i32
    %c0_i32_0 = arith.constant 0 : i32
    return %arg0, %c0_i32 : i32, i32
  }
  func.func @transform_3(%arg0: i32) -> (i32, i32, i32) {
    %c0_i32 = arith.constant 0 : i32
    %c0_i32_0 = arith.constant 0 : i32
    %c0_i32_1 = arith.constant 0 : i32
    return %arg0, %c0_i32, %c0_i32_0 : i32, i32, i32
  }
}

</mosaic_0001>

<llo_original>
// kernel: conv_bn_scale4rec.3
$region0: #{conv_bn_scale4rec.3}
  #allocation0 [shape = 'u32[]', space=smem, size = 0x4, offset = 0x4, fixed_abs, tag = 'smem constant byte address 0x4 - core index']
  #allocation1 [shape = 'u32[144,128]{1,0:T(1,128)}', space=vmem, size = 0x12000, scoped, tag = 'internal scratch']
  %s0 = inlined_call_operand.vmem [shape: f32[1,8,128], index: 0, kind: input, shape index: {}]
  %s1 = inlined_call_operand.vmem [shape: f32[1,128], index: 1, kind: input, shape index: {}]
  %s2 = inlined_call_operand.vmem [shape: f32[512,128], index: 2, kind: input, shape index: {}, may-alias: {2,3}]
  %s3 = inlined_call_operand.vmem [shape: f32[512,128], index: 3, kind: output, shape index: {}, may-alias: {2,3}]
  %s4 = sld [smem:[#allocation0]]
  $region22: #{conv_bn_scale4rec.3} parent=0
    _
  %s6 = ssub.s32 1, %s4
  %s7 = scalar_select 0, %s6, %s4
  // Predicated region
  $region2: #{conv_bn_scale4rec.3} parent=0 // pred_check
    _
  $region3: #{conv_bn_scale4rec.3} parent=0 // pred_check_branch
    %9 = sbr.rel (0) target = $region5
  $region4: #{conv_bn_scale4rec.3} parent=0 // pred_region
    _
  $region5: #{conv_bn_scale4rec.3} parent=0 // pred_fallthru
    _
  // Predicated region
  $region6: #{conv_bn_scale4rec.3} parent=0 // pred_check
    _
  $region7: #{conv_bn_scale4rec.3} parent=0 // pred_check_branch
    %11 = sbr.rel (0) target = $region9
  $region8: #{conv_bn_scale4rec.3} parent=0 // pred_region
    _
  $region9: #{conv_bn_scale4rec.3} parent=0 // pred_fallthru
    _
  // Predicated region
  $region10: #{conv_bn_scale4rec.3} parent=0 // pred_check
    _
  $region11: #{conv_bn_scale4rec.3} parent=0 // pred_check_branch
    %13 = sbr.rel (0) target = $region13
  $region12: #{conv_bn_scale4rec.3} parent=0 // pred_region
    _
  $region13: #{conv_bn_scale4rec.3} parent=0 // pred_fallthru
    _
  %v14 = vld [vmem:[%s0] sm:$0xff]
  %v15 = vmul.f32 %v14, 0.001953125
  %v16 = vmul.f32 %v15, %v15
  %v18 = vrot.slane %v16, 7
  %v20 = vsub.f32 %v15, %v18
  %v21 = vld [vmem:[%s1] sm:$0x1]
  %v22 = vadd.f32 %v20, 1e-05
  %v23 = vrsqrt.pop %v22
  %v26 = vunpack.c.l.s4 1966171168
  %v27 = vunpack.c.0.s8 %v26
  %v28 = vlaneseq
  %v29 = vshrl.u32 %v28, 7
  %v30 = vsub.s32 %v27, %v29
  %v31 = vrot.slane %v23, %v30
  %v32 = vcombine.high %v31, %v31
  %v34 = vunpack.c.l.s4 1966171168
  %v35 = vunpack.c.0.s8 %v34
  %v36 = vlaneseq
  %v37 = vshrl.u32 %v36, 7
  %v38 = vsub.s32 %v35, %v37
  %v39 = vrot.slane %v32, %v38
  %v41 = vmul.f32 %v21, %v39
  %v42 = vsub.f32 0.0, %v15
  %v43 = vmul.f32 %v42, %v41
  %v44 = vld [vmem:[%s2] sm:$0xff]
  %v45 = vld [vmem:[%s2 + $0x8] sm:$0xff]
  %v46 = vld [vmem:[%s2 + $0x10] sm:$0xff]
  %v47 = vld [vmem:[%s2 + $0x18] sm:$0xff]
  %v48 = vld [vmem:[%s2 + $0x20] sm:$0xff]
  %v49 = vld [vmem:[%s2 + $0x28] sm:$0xff]
  %v50 = vld [vmem:[%s2 + $0x30] sm:$0xff]
  %v51 = vld [vmem:[%s2 + $0x38] sm:$0xff]
  %v52 = vld [vmem:[%s2 + $0x40] sm:$0xff]
  %v53 = vld [vmem:[%s2 + $0x48] sm:$0xff]
  %v54 = vld [vmem:[%s2 + $0x50] sm:$0xff]
  %v55 = vld [vmem:[%s2 + $0x58] sm:$0xff]
  %v56 = vld [vmem:[%s2 + $0x60] sm:$0xff]
  %v57 = vld [vmem:[%s2 + $0x68] sm:$0xff]
  %v58 = vld [vmem:[%s2 + $0x70] sm:$0xff]
  %v59 = vld [vmem:[%s2 + $0x78] sm:$0xff]
  %v60 = vld [vmem:[%s2 + $0x80] sm:$0xff]
  %v61 = vld [vmem:[%s2 + $0x88] sm:$0xff]
  %v62 = vld [vmem:[%s2 + $0x90] sm:$0xff]
  %v63 = vld [vmem:[%s2 + $0x98] sm:$0xff]
  %v64 = vld [vmem:[%s2 + $0xa0] sm:$0xff]
  %v65 = vld [vmem:[%s2 + $0xa8] sm:$0xff]
  %v66 = vld [vmem:[%s2 + $0xb0] sm:$0xff]
  %v67 = vld [vmem:[%s2 + $0xb8] sm:$0xff]
  %v68 = vld [vmem:[%s2 + $0xc0] sm:$0xff]
  %v69 = vld [vmem:[%s2 + $0xc8] sm:$0xff]
  %v70 = vld [vmem:[%s2 + $0xd0] sm:$0xff]
  %v71 = vld [vmem:[%s2 + $0xd8] sm:$0xff]
  %v72 = vld [vmem:[%s2 + $0xe0] sm:$0xff]
  %v73 = vld [vmem:[%s2 + $0xe8] sm:$0xff]
  %v74 = vld [vmem:[%s2 + $0xf0] sm:$0xff]
  %v75 = vld [vmem:[%s2 + $0xf8] sm:$0xff]
  %v76 = vld [vmem:[%s2 + $0x100] sm:$0xff]
  %v77 = vld [vmem:[%s2 + $0x108] sm:$0xff]
  %v78 = vld [vmem:[%s2 + $0x110] sm:$0xff]
  %v79 = vld [vmem:[%s2 + $0x118] sm:$0xff]
  %v80 = vld [vmem:[%s2 + $0x120] sm:$0xff]
  %v81 = vld [vmem:[%s2 + $0x128] sm:$0xff]
  %v82 = vld [vmem:[%s2 + $0x130] sm:$0xff]
  %v83 = vld [vmem:[%s2 + $0x138] sm:$0xff]
  %v84 = vld [vmem:[%s2 + $0x140] sm:$0xff]
  %v85 = vld [vmem:[%s2 + $0x148] sm:$0xff]
  %v86 = vld [vmem:[%s2 + $0x150] sm:$0xff]
  %v87 = vld [vmem:[%s2 + $0x158] sm:$0xff]
  %v88 = vld [vmem:[%s2 + $0x160] sm:$0xff]
  %v89 = vld [vmem:[%s2 + $0x168] sm:$0xff]
  %v90 = vld [vmem:[%s2 + $0x170] sm:$0xff]
  %v91 = vld [vmem:[%s2 + $0x178] sm:$0xff]
  %v92 = vld [vmem:[%s2 + $0x180] sm:$0xff]
  %v93 = vld [vmem:[%s2 + $0x188] sm:$0xff]
  %v94 = vld [vmem:[%s2 + $0x190] sm:$0xff]
  %v95 = vld [vmem:[%s2 + $0x198] sm:$0xff]
  %v96 = vld [vmem:[%s2 + $0x1a0] sm:$0xff]
  %v97 = vld [vmem:[%s2 + $0x1a8] sm:$0xff]
  %v98 = vld [vmem:[%s2 + $0x1b0] sm:$0xff]
  %v99 = vld [vmem:[%s2 + $0x1b8] sm:$0xff]
  %v100 = vld [vmem:[%s2 + $0x1c0] sm:$0xff]
  %v101 = vld [vmem:[%s2 + $0x1c8] sm:$0xff]
  %v102 = vld [vmem:[%s2 + $0x1d0] sm:$0xff]
  %v103 = vld [vmem:[%s2 + $0x1d8] sm:$0xff]
  %v104 = vld [vmem:[%s2 + $0x1e0] sm:$0xff]
  %v105 = vld [vmem:[%s2 + $0x1e8] sm:$0xff]
  %v106 = vld [vmem:[%s2 + $0x1f0] sm:$0xff]
  %v107 = vld [vmem:[%s2 + $0x1f8] sm:$0xff]
  %v109 = vlaneseq
  %v110 = vshrl.u32 %v109, 7
  %v111 = vsub.s32 0, %v110
  %v112 = vrot.slane %v41, %v111
  %v114 = vmul.f32 %v44, %v112
  %v115 = vmul.f32 %v45, %v112
  %v116 = vmul.f32 %v46, %v112
  %v117 = vmul.f32 %v47, %v112
  %v118 = vmul.f32 %v48, %v112
  %v119 = vmul.f32 %v49, %v112
  %v120 = vmul.f32 %v50, %v112
  %v121 = vmul.f32 %v51, %v112
  %v122 = vmul.f32 %v52, %v112
  %v123 = vmul.f32 %v53, %v112
  %v124 = vmul.f32 %v54, %v112
  %v125 = vmul.f32 %v55, %v112
  %v126 = vmul.f32 %v56, %v112
  %v127 = vmul.f32 %v57, %v112
  %v128 = vmul.f32 %v58, %v112
  %v129 = vmul.f32 %v59, %v112
  %v130 = vmul.f32 %v60, %v112
  %v131 = vmul.f32 %v61, %v112
  %v132 = vmul.f32 %v62, %v112
  %v133 = vmul.f32 %v63, %v112
  %v134 = vmul.f32 %v64, %v112
  %v135 = vmul.f32 %v65, %v112
  %v136 = vmul.f32 %v66, %v112
  %v137 = vmul.f32 %v67, %v112
  %v138 = vmul.f32 %v68, %v112
  %v139 = vmul.f32 %v69, %v112
  %v140 = vmul.f32 %v70, %v112
  %v141 = vmul.f32 %v71, %v112
  %v142 = vmul.f32 %v72, %v112
  %v143 = vmul.f32 %v73, %v112
  %v144 = vmul.f32 %v74, %v112
  %v145 = vmul.f32 %v75, %v112
  %v146 = vmul.f32 %v76, %v112
  %v147 = vmul.f32 %v77, %v112
  %v148 = vmul.f32 %v78, %v112
  %v149 = vmul.f32 %v79, %v112
  %v150 = vmul.f32 %v80, %v112
  %v151 = vmul.f32 %v81, %v112
  %v152 = vmul.f32 %v82, %v112
  %v153 = vmul.f32 %v83, %v112
  %v154 = vmul.f32 %v84, %v112
  %v155 = vmul.f32 %v85, %v112
  %v156 = vmul.f32 %v86, %v112
  %v157 = vmul.f32 %v87, %v112
  %v158 = vmul.f32 %v88, %v112
  %v159 = vmul.f32 %v89, %v112
  %v160 = vmul.f32 %v90, %v112
  %v161 = vmul.f32 %v91, %v112
  %v162 = vmul.f32 %v92, %v112
  %v163 = vmul.f32 %v93, %v112
  %v164 = vmul.f32 %v94, %v112
  %v165 = vmul.f32 %v95, %v112
  %v166 = vmul.f32 %v96, %v112
  %v167 = vmul.f32 %v97, %v112
  %v168 = vmul.f32 %v98, %v112
  %v169 = vmul.f32 %v99, %v112
  %v170 = vmul.f32 %v100, %v112
  %v171 = vmul.f32 %v101, %v112
  %v172 = vmul.f32 %v102, %v112
  %v173 = vmul.f32 %v103, %v112
  %v174 = vmul.f32 %v104, %v112
  %v175 = vmul.f32 %v105, %v112
  %v176 = vmul.f32 %v106, %v112
  %v177 = vmul.f32 %v107, %v112
  %v178 = vlaneseq
  %v179 = vshrl.u32 %v178, 7
  %v180 = vsub.s32 0, %v179
  %v181 = vrot.slane %v43, %v180
  %v182 = vadd.f32 %v114, %v181
  %v183 = vadd.f32 %v115, %v181
  %v184 = vadd.f32 %v116, %v181
  %v185 = vadd.f32 %v117, %v181
  %v186 = vadd.f32 %v118, %v181
  %v187 = vadd.f32 %v119, %v181
  %v188 = vadd.f32 %v120, %v181
  %v189 = vadd.f32 %v121, %v181
  %v190 = vadd.f32 %v122, %v181
  %v191 = vadd.f32 %v123, %v181
  %v192 = vadd.f32 %v124, %v181
  %v193 = vadd.f32 %v125, %v181
  %v194 = vadd.f32 %v126, %v181
  %v195 = vadd.f32 %v127, %v181
  %v196 = vadd.f32 %v128, %v181
  %v197 = vadd.f32 %v129, %v181
  %v198 = vadd.f32 %v130, %v181
  %v199 = vadd.f32 %v131, %v181
  %v200 = vadd.f32 %v132, %v181
  %v201 = vadd.f32 %v133, %v181
  %v202 = vadd.f32 %v134, %v181
  %v203 = vadd.f32 %v135, %v181
  %v204 = vadd.f32 %v136, %v181
  %v205 = vadd.f32 %v137, %v181
  %v206 = vadd.f32 %v138, %v181
  %v207 = vadd.f32 %v139, %v181
  %v208 = vadd.f32 %v140, %v181
  %v209 = vadd.f32 %v141, %v181
  %v210 = vadd.f32 %v142, %v181
  %v211 = vadd.f32 %v143, %v181
  %v212 = vadd.f32 %v144, %v181
  %v213 = vadd.f32 %v145, %v181
  %v214 = vadd.f32 %v146, %v181
  %v215 = vadd.f32 %v147, %v181
  %v216 = vadd.f32 %v148, %v181
  %v217 = vadd.f32 %v149, %v181
  %v218 = vadd.f32 %v150, %v181
  %v219 = vadd.f32 %v151, %v181
  %v220 = vadd.f32 %v152, %v181
  %v221 = vadd.f32 %v153, %v181
  %v222 = vadd.f32 %v154, %v181
  %v223 = vadd.f32 %v155, %v181
  %v224 = vadd.f32 %v156, %v181
  %v225 = vadd.f32 %v157, %v181
  %v226 = vadd.f32 %v158, %v181
  %v227 = vadd.f32 %v159, %v181
  %v228 = vadd.f32 %v160, %v181
  %v229 = vadd.f32 %v161, %v181
  %v230 = vadd.f32 %v162, %v181
  %v231 = vadd.f32 %v163, %v181
  %v232 = vadd.f32 %v164, %v181
  %v233 = vadd.f32 %v165, %v181
  %v234 = vadd.f32 %v166, %v181
  %v235 = vadd.f32 %v167, %v181
  %v236 = vadd.f32 %v168, %v181
  %v237 = vadd.f32 %v169, %v181
  %v238 = vadd.f32 %v170, %v181
  %v239 = vadd.f32 %v171, %v181
  %v240 = vadd.f32 %v172, %v181
  %v241 = vadd.f32 %v173, %v181
  %v242 = vadd.f32 %v174, %v181
  %v243 = vadd.f32 %v175, %v181
  %v244 = vadd.f32 %v176, %v181
  %v245 = vadd.f32 %v177, %v181
  %246 = vst [vmem:[%s3] sm:$0xff] %v182
  %247 = vst [vmem:[%s3 + $0x8] sm:$0xff] %v183
  %248 = vst [vmem:[%s3 + $0x10] sm:$0xff] %v184
  %249 = vst [vmem:[%s3 + $0x18] sm:$0xff] %v185
  %250 = vst [vmem:[%s3 + $0x20] sm:$0xff] %v186
  %251 = vst [vmem:[%s3 + $0x28] sm:$0xff] %v187
  %252 = vst [vmem:[%s3 + $0x30] sm:$0xff] %v188
  %253 = vst [vmem:[%s3 + $0x38] sm:$0xff] %v189
  %254 = vst [vmem:[%s3 + $0x40] sm:$0xff] %v190
  %255 = vst [vmem:[%s3 + $0x48] sm:$0xff] %v191
  %256 = vst [vmem:[%s3 + $0x50] sm:$0xff] %v192
  %257 = vst [vmem:[%s3 + $0x58] sm:$0xff] %v193
  %258 = vst [vmem:[%s3 + $0x60] sm:$0xff] %v194
  %259 = vst [vmem:[%s3 + $0x68] sm:$0xff] %v195
  %260 = vst [vmem:[%s3 + $0x70] sm:$0xff] %v196
  %261 = vst [vmem:[%s3 + $0x78] sm:$0xff] %v197
  %262 = vst [vmem:[%s3 + $0x80] sm:$0xff] %v198
  %263 = vst [vmem:[%s3 + $0x88] sm:$0xff] %v199
  %264 = vst [vmem:[%s3 + $0x90] sm:$0xff] %v200
  %265 = vst [vmem:[%s3 + $0x98] sm:$0xff] %v201
  %266 = vst [vmem:[%s3 + $0xa0] sm:$0xff] %v202
  %267 = vst [vmem:[%s3 + $0xa8] sm:$0xff] %v203
  %268 = vst [vmem:[%s3 + $0xb0] sm:$0xff] %v204
  %269 = vst [vmem:[%s3 + $0xb8] sm:$0xff] %v205
  %270 = vst [vmem:[%s3 + $0xc0] sm:$0xff] %v206
  %271 = vst [vmem:[%s3 + $0xc8] sm:$0xff] %v207
  %272 = vst [vmem:[%s3 + $0xd0] sm:$0xff] %v208
  %273 = vst [vmem:[%s3 + $0xd8] sm:$0xff] %v209
  %274 = vst [vmem:[%s3 + $0xe0] sm:$0xff] %v210
  %275 = vst [vmem:[%s3 + $0xe8] sm:$0xff] %v211
  %276 = vst [vmem:[%s3 + $0xf0] sm:$0xff] %v212
  %277 = vst [vmem:[%s3 + $0xf8] sm:$0xff] %v213
  %278 = vst [vmem:[%s3 + $0x100] sm:$0xff] %v214
  %279 = vst [vmem:[%s3 + $0x108] sm:$0xff] %v215
  %280 = vst [vmem:[%s3 + $0x110] sm:$0xff] %v216
  %281 = vst [vmem:[%s3 + $0x118] sm:$0xff] %v217
  %282 = vst [vmem:[%s3 + $0x120] sm:$0xff] %v218
  %283 = vst [vmem:[%s3 + $0x128] sm:$0xff] %v219
  %284 = vst [vmem:[%s3 + $0x130] sm:$0xff] %v220
  %285 = vst [vmem:[%s3 + $0x138] sm:$0xff] %v221
  %286 = vst [vmem:[%s3 + $0x140] sm:$0xff] %v222
  %287 = vst [vmem:[%s3 + $0x148] sm:$0xff] %v223
  %288 = vst [vmem:[%s3 + $0x150] sm:$0xff] %v224
  %289 = vst [vmem:[%s3 + $0x158] sm:$0xff] %v225
  %290 = vst [vmem:[%s3 + $0x160] sm:$0xff] %v226
  %291 = vst [vmem:[%s3 + $0x168] sm:$0xff] %v227
  %292 = vst [vmem:[%s3 + $0x170] sm:$0xff] %v228
  %293 = vst [vmem:[%s3 + $0x178] sm:$0xff] %v229
  %294 = vst [vmem:[%s3 + $0x180] sm:$0xff] %v230
  %295 = vst [vmem:[%s3 + $0x188] sm:$0xff] %v231
  %296 = vst [vmem:[%s3 + $0x190] sm:$0xff] %v232
  %297 = vst [vmem:[%s3 + $0x198] sm:$0xff] %v233
  %298 = vst [vmem:[%s3 + $0x1a0] sm:$0xff] %v234
  %299 = vst [vmem:[%s3 + $0x1a8] sm:$0xff] %v235
  %300 = vst [vmem:[%s3 + $0x1b0] sm:$0xff] %v236
  %301 = vst [vmem:[%s3 + $0x1b8] sm:$0xff] %v237
  %302 = vst [vmem:[%s3 + $0x1c0] sm:$0xff] %v238
  %303 = vst [vmem:[%s3 + $0x1c8] sm:$0xff] %v239
  %304 = vst [vmem:[%s3 + $0x1d0] sm:$0xff] %v240
  %305 = vst [vmem:[%s3 + $0x1d8] sm:$0xff] %v241
  %306 = vst [vmem:[%s3 + $0x1e0] sm:$0xff] %v242
  %307 = vst [vmem:[%s3 + $0x1e8] sm:$0xff] %v243
  %308 = vst [vmem:[%s3 + $0x1f0] sm:$0xff] %v244
  %309 = vst [vmem:[%s3 + $0x1f8] sm:$0xff] %v245
  // Predicated region
  $region14: #{conv_bn_scale4rec.3} parent=0 // pred_check
    _
  $region15: #{conv_bn_scale4rec.3} parent=0 // pred_check_branch
    %311 = sbr.rel (0) target = $region17
  $region16: #{conv_bn_scale4rec.3} parent=0 // pred_region
    _
  $region17: #{conv_bn_scale4rec.3} parent=0 // pred_fallthru
    _
  // Predicated region
  $region18: #{conv_bn_scale4rec.3} parent=0 // pred_check
    _
  $region19: #{conv_bn_scale4rec.3} parent=0 // pred_check_branch
    %313 = sbr.rel (0) target = $region21
  $region20: #{conv_bn_scale4rec.3} parent=0 // pred_region
    _
  $region21: #{conv_bn_scale4rec.3} parent=0 // pred_fallthru
    _

// kernel: conv_bn_scale4rec.2
$region0: #{conv_bn_scale4rec.2}
  #allocation0 [shape = 'u32[]', space=smem, size = 0x4, offset = 0x4, fixed_abs, tag = 'smem constant byte address 0x4 - core index']
  #allocation1 [shape = 'u32[144,128]{1,0:T(1,128)}', space=vmem, size = 0x12000, scoped, tag = 'internal scratch']
  %s0 = inlined_call_operand.vmem [shape: bf16[512,36], index: 0, kind: input, shape index: {}]
  %s1 = inlined_call_operand.vmem [shape: bf16[36,128], index: 1, kind: input, shape index: {}]
  %s2 = inlined_call_operand.vmem [shape: f32[512,128], index: 2, kind: output, shape index: {0}]
  %s3 = inlined_call_operand.vmem [shape: f32[1,8,128], index: 3, kind: output, shape index: {1}]
  %4 = xla_tuple %s2, %s3
  %s5 = sld [smem:[#allocation0]]
  $region26: #{conv_bn_scale4rec.2} parent=0
    _
  %s7 = ssub.s32 1, %s5
  %s8 = scalar_select 0, %s7, %s5
  // Predicated region
  $region2: #{conv_bn_scale4rec.2} parent=0 // pred_check
    _
  $region3: #{conv_bn_scale4rec.2} parent=0 // pred_check_branch
    %10 = sbr.rel (0) target = $region5
  $region4: #{conv_bn_scale4rec.2} parent=0 // pred_region
    _
  $region5: #{conv_bn_scale4rec.2} parent=0 // pred_fallthru
    _
  // Predicated region
  $region6: #{conv_bn_scale4rec.2} parent=0 // pred_check
    _
  $region7: #{conv_bn_scale4rec.2} parent=0 // pred_check_branch
    %12 = sbr.rel (0) target = $region9
  $region8: #{conv_bn_scale4rec.2} parent=0 // pred_region
    _
  $region9: #{conv_bn_scale4rec.2} parent=0 // pred_fallthru
    _
  %v14 = vld [vmem:[%s0] sm:$0xf]
  %v15 = vld [vmem:[%s0 + $0x4] sm:$0xf]
  %v16 = vld [vmem:[%s0 + $0x8] sm:$0xf]
  %v17 = vld [vmem:[%s0 + $0xc] sm:$0xf]
  %v18 = vld [vmem:[%s0 + $0x10] sm:$0xf]
  %v19 = vld [vmem:[%s0 + $0x14] sm:$0xf]
  %v20 = vld [vmem:[%s0 + $0x18] sm:$0xf]
  %v21 = vld [vmem:[%s0 + $0x1c] sm:$0xf]
  %v22 = vld [vmem:[%s0 + $0x20] sm:$0xf]
  %v23 = vld [vmem:[%s0 + $0x24] sm:$0xf]
  %v24 = vld [vmem:[%s0 + $0x28] sm:$0xf]
  %v25 = vld [vmem:[%s0 + $0x2c] sm:$0xf]
  %v26 = vld [vmem:[%s0 + $0x30] sm:$0xf]
  %v27 = vld [vmem:[%s0 + $0x34] sm:$0xf]
  %v28 = vld [vmem:[%s0 + $0x38] sm:$0xf]
  %v29 = vld [vmem:[%s0 + $0x3c] sm:$0xf]
  %v30 = vld [vmem:[%s0 + $0x40] sm:$0xf]
  %v31 = vld [vmem:[%s0 + $0x44] sm:$0xf]
  %v32 = vld [vmem:[%s0 + $0x48] sm:$0xf]
  %v33 = vld [vmem:[%s0 + $0x4c] sm:$0xf]
  %v34 = vld [vmem:[%s0 + $0x50] sm:$0xf]
  %v35 = vld [vmem:[%s0 + $0x54] sm:$0xf]
  %v36 = vld [vmem:[%s0 + $0x58] sm:$0xf]
  %v37 = vld [vmem:[%s0 + $0x5c] sm:$0xf]
  %v38 = vld [vmem:[%s0 + $0x60] sm:$0xf]
  %v39 = vld [vmem:[%s0 + $0x64] sm:$0xf]
  %v40 = vld [vmem:[%s0 + $0x68] sm:$0xf]
  %v41 = vld [vmem:[%s0 + $0x6c] sm:$0xf]
  %v42 = vld [vmem:[%s0 + $0x70] sm:$0xf]
  %v43 = vld [vmem:[%s0 + $0x74] sm:$0xf]
  %v44 = vld [vmem:[%s0 + $0x78] sm:$0xf]
  %v45 = vld [vmem:[%s0 + $0x7c] sm:$0xf]
  %v46 = vld [vmem:[%s0 + $0x80] sm:$0xf]
  %v47 = vld [vmem:[%s0 + $0x84] sm:$0xf]
  %v48 = vld [vmem:[%s0 + $0x88] sm:$0xf]
  %v49 = vld [vmem:[%s0 + $0x8c] sm:$0xf]
  %v50 = vld [vmem:[%s0 + $0x90] sm:$0xf]
  %v51 = vld [vmem:[%s0 + $0x94] sm:$0xf]
  %v52 = vld [vmem:[%s0 + $0x98] sm:$0xf]
  %v53 = vld [vmem:[%s0 + $0x9c] sm:$0xf]
  %v54 = vld [vmem:[%s0 + $0xa0] sm:$0xf]
  %v55 = vld [vmem:[%s0 + $0xa4] sm:$0xf]
  %v56 = vld [vmem:[%s0 + $0xa8] sm:$0xf]
  %v57 = vld [vmem:[%s0 + $0xac] sm:$0xf]
  %v58 = vld [vmem:[%s0 + $0xb0] sm:$0xf]
  %v59 = vld [vmem:[%s0 + $0xb4] sm:$0xf]
  %v60 = vld [vmem:[%s0 + $0xb8] sm:$0xf]
  %v61 = vld [vmem:[%s0 + $0xbc] sm:$0xf]
  %v62 = vld [vmem:[%s0 + $0xc0] sm:$0xf]
  %v63 = vld [vmem:[%s0 + $0xc4] sm:$0xf]
  %v64 = vld [vmem:[%s0 + $0xc8] sm:$0xf]
  %v65 = vld [vmem:[%s0 + $0xcc] sm:$0xf]
  %v66 = vld [vmem:[%s0 + $0xd0] sm:$0xf]
  %v67 = vld [vmem:[%s0 + $0xd4] sm:$0xf]
  %v68 = vld [vmem:[%s0 + $0xd8] sm:$0xf]
  %v69 = vld [vmem:[%s0 + $0xdc] sm:$0xf]
  %v70 = vld [vmem:[%s0 + $0xe0] sm:$0xf]
  %v71 = vld [vmem:[%s0 + $0xe4] sm:$0xf]
  %v72 = vld [vmem:[%s0 + $0xe8] sm:$0xf]
  %v73 = vld [vmem:[%s0 + $0xec] sm:$0xf]
  %v74 = vld [vmem:[%s0 + $0xf0] sm:$0xf]
  %v75 = vld [vmem:[%s0 + $0xf4] sm:$0xf]
  %v76 = vld [vmem:[%s0 + $0xf8] sm:$0xf]
  %v77 = vld [vmem:[%s0 + $0xfc] sm:$0xf]
  %v78 = vld [vmem:[%s1] sm:$0xf]
  %v79 = vld [vmem:[%s1 + $0x4] sm:$0xf]
  %v80 = vld [vmem:[%s1 + $0x8] sm:$0xf]
  %v81 = vld [vmem:[%s1 + $0xc] sm:$0xf]
  %v82 = vld [vmem:[%s1 + $0x10] sm:$0x3]
  %v147 = vunpack.c.l.b16 %v14
  %v148 = vunpack.c.l.b16 %v15
  %v149 = vunpack.c.l.b16 %v16
  %v150 = vunpack.c.l.b16 %v17
  %v151 = vunpack.c.l.b16 %v18
  %v152 = vunpack.c.l.b16 %v19
  %v153 = vunpack.c.l.b16 %v20
  %v154 = vunpack.c.l.b16 %v21
  %v155 = vunpack.c.l.b16 %v22
  %v156 = vunpack.c.l.b16 %v23
  %v157 = vunpack.c.l.b16 %v24
  %v158 = vunpack.c.l.b16 %v25
  %v159 = vunpack.c.l.b16 %v26
  %v160 = vunpack.c.l.b16 %v27
  %v161 = vunpack.c.l.b16 %v28
  %v162 = vunpack.c.l.b16 %v29
  %v163 = vunpack.c.l.b16 %v30
  %v164 = vunpack.c.l.b16 %v31
  %v165 = vunpack.c.l.b16 %v32
  %v166 = vunpack.c.l.b16 %v33
  %v167 = vunpack.c.l.b16 %v34
  %v168 = vunpack.c.l.b16 %v35
  %v169 = vunpack.c.l.b16 %v36
  %v170 = vunpack.c.l.b16 %v37
  %v171 = vunpack.c.l.b16 %v38
  %v172 = vunpack.c.l.b16 %v39
  %v173 = vunpack.c.l.b16 %v40
  %v174 = vunpack.c.l.b16 %v41
  %v175 = vunpack.c.l.b16 %v42
  %v176 = vunpack.c.l.b16 %v43
  %v177 = vunpack.c.l.b16 %v44
  %v178 = vunpack.c.l.b16 %v45
  %v179 = vunpack.c.l.b16 %v46
  %v180 = vunpack.c.l.b16 %v47
  %v181 = vunpack.c.l.b16 %v48
  %v182 = vunpack.c.l.b16 %v49
  %v183 = vunpack.c.l.b16 %v50
  %v184 = vunpack.c.l.b16 %v51
  %v185 = vunpack.c.l.b16 %v52
  %v186 = vunpack.c.l.b16 %v53
  %v187 = vunpack.c.l.b16 %v54
  %v188 = vunpack.c.l.b16 %v55
  %v189 = vunpack.c.l.b16 %v56
  %v190 = vunpack.c.l.b16 %v57
  %v191 = vunpack.c.l.b16 %v58
  %v192 = vunpack.c.l.b16 %v59
  %v193 = vunpack.c.l.b16 %v60
  %v194 = vunpack.c.l.b16 %v61
  %v195 = vunpack.c.l.b16 %v62
  %v196 = vunpack.c.l.b16 %v63
  %v197 = vunpack.c.l.b16 %v64
  %v198 = vunpack.c.l.b16 %v65
  %v199 = vunpack.c.l.b16 %v66
  %v200 = vunpack.c.l.b16 %v67
  %v201 = vunpack.c.l.b16 %v68
  %v202 = vunpack.c.l.b16 %v69
  %v203 = vunpack.c.l.b16 %v70
  %v204 = vunpack.c.l.b16 %v71
  %v205 = vunpack.c.l.b16 %v72
  %v206 = vunpack.c.l.b16 %v73
  %v207 = vunpack.c.l.b16 %v74
  %v208 = vunpack.c.l.b16 %v75
  %v209 = vunpack.c.l.b16 %v76
  %v210 = vunpack.c.l.b16 %v77
  %v211 = vpack.c.b16 %v148, %v147
  %v212 = vpack.c.b16 %v150, %v149
  %v213 = vpack.c.b16 %v152, %v151
  %v214 = vpack.c.b16 %v154, %v153
  %v215 = vpack.c.b16 %v156, %v155
  %v216 = vpack.c.b16 %v158, %v157
  %v217 = vpack.c.b16 %v160, %v159
  %v218 = vpack.c.b16 %v162, %v161
  %v219 = vpack.c.b16 %v164, %v163
  %v220 = vpack.c.b16 %v166, %v165
  %v221 = vpack.c.b16 %v168, %v167
  %v222 = vpack.c.b16 %v170, %v169
  %v223 = vpack.c.b16 %v172, %v171
  %v224 = vpack.c.b16 %v174, %v173
  %v225 = vpack.c.b16 %v176, %v175
  %v226 = vpack.c.b16 %v178, %v177
  %v227 = vpack.c.b16 %v180, %v179
  %v228 = vpack.c.b16 %v182, %v181
  %v229 = vpack.c.b16 %v184, %v183
  %v230 = vpack.c.b16 %v186, %v185
  %v231 = vpack.c.b16 %v188, %v187
  %v232 = vpack.c.b16 %v190, %v189
  %v233 = vpack.c.b16 %v192, %v191
  %v234 = vpack.c.b16 %v194, %v193
  %v235 = vpack.c.b16 %v196, %v195
  %v236 = vpack.c.b16 %v198, %v197
  %v237 = vpack.c.b16 %v200, %v199
  %v238 = vpack.c.b16 %v202, %v201
  %v239 = vpack.c.b16 %v204, %v203
  %v240 = vpack.c.b16 %v206, %v205
  %v241 = vpack.c.b16 %v208, %v207
  %v242 = vpack.c.b16 %v210, %v209
  %v248 = vunpack.c.l.b16 %v78
  %v249 = vunpack.c.l.b16 %v79
  %v250 = vunpack.c.l.b16 %v80
  %v251 = vunpack.c.l.b16 %v81
  %v252 = vunpack.c.l.b16 %v82
  %v253 = vpack.c.b16 %v249, %v248
  %v254 = vpack.c.b16 %v251, %v250
  %v255 = vpack.c.b16 %v252, %v252
  %vm258 = vcmask 293888
  %v260 = vsel %vm258, %v211, 0
  %v263 = vsel %vm258, %v212, 0
  %v266 = vsel %vm258, %v213, 0
  %v269 = vsel %vm258, %v214, 0
  %v272 = vsel %vm258, %v215, 0
  %v275 = vsel %vm258, %v216, 0
  %v278 = vsel %vm258, %v217, 0
  %v281 = vsel %vm258, %v218, 0
  %v284 = vsel %vm258, %v219, 0
  %v287 = vsel %vm258, %v220, 0
  %v290 = vsel %vm258, %v221, 0
  %v293 = vsel %vm258, %v222, 0
  %v296 = vsel %vm258, %v223, 0
  %v299 = vsel %vm258, %v224, 0
  %v302 = vsel %vm258, %v225, 0
  %v305 = vsel %vm258, %v226, 0
  %v308 = vsel %vm258, %v227, 0
  %v311 = vsel %vm258, %v228, 0
  %v314 = vsel %vm258, %v229, 0
  %v317 = vsel %vm258, %v230, 0
  %v320 = vsel %vm258, %v231, 0
  %v323 = vsel %vm258, %v232, 0
  %v326 = vsel %vm258, %v233, 0
  %v329 = vsel %vm258, %v234, 0
  %v332 = vsel %vm258, %v235, 0
  %v335 = vsel %vm258, %v236, 0
  %v338 = vsel %vm258, %v237, 0
  %v341 = vsel %vm258, %v238, 0
  %v344 = vsel %vm258, %v239, 0
  %v347 = vsel %vm258, %v240, 0
  %v350 = vsel %vm258, %v241, 0
  %v353 = vsel %vm258, %v242, 0
  %vm355 = vcmask 1041408
  %v357 = vsel %vm355, %v255, 0
  %359 = vmatprep.subr.bf16.mxu0 0
  %360 = vmatpush1.bf16.msra.mxu0 %v253
  %361 = vmatprep.subr.bf16.mxu0 0
  %362 = vmatpush1.bf16.msra.mxu0 %v254
  %363 = vmatprep.subr.bf16.mxu0 0
  %364 = vmatpush1.bf16.msra.mxu0 %v357
  %365 = vmatprep.subr.bf16.mxu0 0
  %366 = vmatpush1.bf16.msra.mxu0 0
  %367 = vmatprep.subr.bf16.mxu0 0
  %368 = vmatpush1.bf16.msra.mxu0 0
  %369 = vmatprep.subr.bf16.mxu0 0
  %370 = vmatpush1.bf16.msra.mxu0 0
  %371 = vmatprep.subr.bf16.mxu0 0
  %372 = vmatpush1.bf16.msra.mxu0 0
  %373 = vmatprep.subr.bf16.mxu0 0
  %374 = vmatpush1.bf16.msra.mxu0 0
  %375 = vmatprep.subr.bf16.mxu0 0
  %376 = vmatpush1.bf16.msra.mxu0 0
  %377 = vmatprep.subr.bf16.mxu0 0
  %378 = vmatpush1.bf16.msra.mxu0 0
  %379 = vmatprep.subr.bf16.mxu0 0
  %380 = vmatpush1.bf16.msra.mxu0 0
  %381 = vmatprep.subr.bf16.mxu0 0
  %382 = vmatpush1.bf16.msra.mxu0 0
  %383 = vmatprep.subr.bf16.mxu0 0
  %384 = vmatpush1.bf16.msra.mxu0 0
  %385 = vmatprep.subr.bf16.mxu0 0
  %386 = vmatpush1.bf16.msra.mxu0 0
  %387 = vmatprep.subr.bf16.mxu0 0
  %388 = vmatpush1.bf16.msra.mxu0 0
  %389 = vmatprep.subr.bf16.mxu0 0
  %390 = vmatpush1.bf16.msra.mxu0 0
  %391 = vmatprep.mubr.bf16.mxu0 0
  %392 = vmatmul.mubr.bf16.gmra.mrb[0].mxu0 %v260
  %v393 = vpop.f32.mrb[0].mxu0
  %v394 = vadd.f32 0.0, %v393
  %v395 = vpop.f32.mrb[0].mxu0
  %v396 = vpop.f32.mrb[0].mxu0
  %v397 = vadd.f32 0.0, %v396
  %v398 = vpop.f32.mrb[0].mxu0
  %399 = vmatprep.mubr.bf16.mxu0 0
  %400 = vmatmul.mubr.bf16.gmra.mrb[0].mxu0 %v263
  %v401 = vpop.f32.mrb[0].mxu0
  %v402 = vadd.f32 0.0, %v401
  %v403 = vpop.f32.mrb[0].mxu0
  %v404 = vpop.f32.mrb[0].mxu0
  %v405 = vadd.f32 0.0, %v404
  %v406 = vpop.f32.mrb[0].mxu0
  %407 = vmatprep.mubr.bf16.mxu0 0
  %408 = vmatmul.mubr.bf16.gmra.mrb[0].mxu0 %v266
  %v409 = vpop.f32.mrb[0].mxu0
  %v410 = vadd.f32 0.0, %v409
  %v411 = vpop.f32.mrb[0].mxu0
  %v412 = vpop.f32.mrb[0].mxu0
  %v413 = vadd.f32 0.0, %v412
  %v414 = vpop.f32.mrb[0].mxu0
  %415 = vmatprep.mubr.bf16.mxu0 0
  %416 = vmatmul.mubr.bf16.gmra.mrb[0].mxu0 %v269
  %v417 = vpop.f32.mrb[0].mxu0
  %v418 = vadd.f32 0.0, %v417
  %v419 = vpop.f32.mrb[0].mxu0
  %v420 = vpop.f32.mrb[0].mxu0
  %v421 = vadd.f32 0.0, %v420
  %v422 = vpop.f32.mrb[0].mxu0
  %423 = vmatprep.mubr.bf16.mxu0 0
  %424 = vmatmul.mubr.bf16.gmra.mrb[0].mxu0 %v272
  %v425 = vpop.f32.mrb[0].mxu0
  %v426 = vadd.f32 0.0, %v425
  %v427 = vpop.f32.mrb[0].mxu0
  %v428 = vpop.f32.mrb[0].mxu0
  %v429 = vadd.f32 0.0, %v428
  %v430 = vpop.f32.mrb[0].mxu0
  %431 = vmatprep.mubr.bf16.mxu0 0
  %432 = vmatmul.mubr.bf16.gmra.mrb[0].mxu0 %v275
  %v433 = vpop.f32.mrb[0].mxu0
  %v434 = vadd.f32 0.0, %v433
  %v435 = vpop.f32.mrb[0].mxu0
  %v436 = vpop.f32.mrb[0].mxu0
  %v437 = vadd.f32 0.0, %v436
  %v438 = vpop.f32.mrb[0].mxu0
  %439 = vmatprep.mubr.bf16.mxu0 0
  %440 = vmatmul.mubr.bf16.gmra.mrb[0].mxu0 %v278
  %v441 = vpop.f32.mrb[0].mxu0
  %v442 = vadd.f32 0.0, %v441
  %v443 = vpop.f32.mrb[0].mxu0
  %v444 = vpop.f32.mrb[0].mxu0
  %v445 = vadd.f32 0.0, %v444
  %v446 = vpop.f32.mrb[0].mxu0
  %447 = vmatprep.mubr.bf16.mxu0 0
  %448 = vmatmul.mubr.bf16.gmra.mrb[0].mxu0 %v281
  %v449 = vpop.f32.mrb[0].mxu0
  %v450 = vadd.f32 0.0, %v449
  %v451 = vpop.f32.mrb[0].mxu0
  %v452 = vpop.f32.mrb[0].mxu0
  %v453 = vadd.f32 0.0, %v452
  %v454 = vpop.f32.mrb[0].mxu0
  %455 = vmatprep.mubr.bf16.mxu0 0
  %456 = vmatmul.mubr.bf16.gmra.mrb[0].mxu0 %v284
  %v457 = vpop.f32.mrb[0].mxu0
  %v458 = vadd.f32 0.0, %v457
  %v459 = vpop.f32.mrb[0].mxu0
  %v460 = vpop.f32.mrb[0].mxu0
  %v461 = vadd.f32 0.0, %v460
  %v462 = vpop.f32.mrb[0].mxu0
  %463 = vmatprep.mubr.bf16.mxu0 0
  %464 = vmatmul.mubr.bf16.gmra.mrb[0].mxu0 %v287
  %v465 = vpop.f32.mrb[0].mxu0
  %v466 = vadd.f32 0.0, %v465
  %v467 = vpop.f32.mrb[0].mxu0
  %v468 = vpop.f32.mrb[0].mxu0
  %v469 = vadd.f32 0.0, %v468
  %v470 = vpop.f32.mrb[0].mxu0
  %471 = vmatprep.mubr.bf16.mxu0 0
  %472 = vmatmul.mubr.bf16.gmra.mrb[0].mxu0 %v290
  %v473 = vpop.f32.mrb[0].mxu0
  %v474 = vadd.f32 0.0, %v473
  %v475 = vpop.f32.mrb[0].mxu0
  %v476 = vpop.f32.mrb[0].mxu0
  %v477 = vadd.f32 0.0, %v476
  %v478 = vpop.f32.mrb[0].mxu0
  %479 = vmatprep.mubr.bf16.mxu0 0
  %480 = vmatmul.mubr.bf16.gmra.mrb[0].mxu0 %v293
  %v481 = vpop.f32.mrb[0].mxu0
  %v482 = vadd.f32 0.0, %v481
  %v483 = vpop.f32.mrb[0].mxu0
  %v484 = vpop.f32.mrb[0].mxu0
  %v485 = vadd.f32 0.0, %v484
  %v486 = vpop.f32.mrb[0].mxu0
  %487 = vmatprep.mubr.bf16.mxu0 0
  %488 = vmatmul.mubr.bf16.gmra.mrb[0].mxu0 %v296
  %v489 = vpop.f32.mrb[0].mxu0
  %v490 = vadd.f32 0.0, %v489
  %v491 = vpop.f32.mrb[0].mxu0
  %v492 = vpop.f32.mrb[0].mxu0
  %v493 = vadd.f32 0.0, %v492
  %v494 = vpop.f32.mrb[0].mxu0
  %495 = vmatprep.mubr.bf16.mxu0 0
  %496 = vmatmul.mubr.bf16.gmra.mrb[0].mxu0 %v299
  %v497 = vpop.f32.mrb[0].mxu0
  %v498 = vadd.f32 0.0, %v497
  %v499 = vpop.f32.mrb[0].mxu0
  %v500 = vpop.f32.mrb[0].mxu0
  %v501 = vadd.f32 0.0, %v500
  %v502 = vpop.f32.mrb[0].mxu0
  %503 = vmatprep.mubr.bf16.mxu0 0
  %504 = vmatmul.mubr.bf16.gmra.mrb[0].mxu0 %v302
  %v505 = vpop.f32.mrb[0].mxu0
  %v506 = vadd.f32 0.0, %v505
  %v507 = vpop.f32.mrb[0].mxu0
  %v508 = vpop.f32.mrb[0].mxu0
  %v509 = vadd.f32 0.0, %v508
  %v510 = vpop.f32.mrb[0].mxu0
  %511 = vmatprep.mubr.bf16.mxu0 0
  %512 = vmatmul.mubr.bf16.gmra.mrb[0].mxu0 %v305
  %v513 = vpop.f32.mrb[0].mxu0
  %v514 = vadd.f32 0.0, %v513
  %v515 = vpop.f32.mrb[0].mxu0
  %v516 = vpop.f32.mrb[0].mxu0
  %v517 = vadd.f32 0.0, %v516
  %v518 = vpop.f32.mrb[0].mxu0
  %519 = vmatprep.mubr.bf16.mxu0 0
  %520 = vmatmul.mubr.bf16.gmra.mrb[0].mxu0 %v308
  %v521 = vpop.f32.mrb[0].mxu0
  %v522 = vadd.f32 0.0, %v521
  %v523 = vpop.f32.mrb[0].mxu0
  %v524 = vpop.f32.mrb[0].mxu0
  %v525 = vadd.f32 0.0, %v524
  %v526 = vpop.f32.mrb[0].mxu0
  %527 = vmatprep.mubr.bf16.mxu0 0
  %528 = vmatmul.mubr.bf16.gmra.mrb[0].mxu0 %v311
  %v529 = vpop.f32.mrb[0].mxu0
  %v530 = vadd.f32 0.0, %v529
  %v531 = vpop.f32.mrb[0].mxu0
  %v532 = vpop.f32.mrb[0].mxu0
  %v533 = vadd.f32 0.0, %v532
  %v534 = vpop.f32.mrb[0].mxu0
  %535 = vmatprep.mubr.bf16.mxu0 0
  %536 = vmatmul.mubr.bf16.gmra.mrb[0].mxu0 %v314
  %v537 = vpop.f32.mrb[0].mxu0
  %v538 = vadd.f32 0.0, %v537
  %v539 = vpop.f32.mrb[0].mxu0
  %v540 = vpop.f32.mrb[0].mxu0
  %v541 = vadd.f32 0.0, %v540
  %v542 = vpop.f32.mrb[0].mxu0
  %543 = vmatprep.mubr.bf16.mxu0 0
  %544 = vmatmul.mubr.bf16.gmra.mrb[0].mxu0 %v317
  %v545 = vpop.f32.mrb[0].mxu0
  %v546 = vadd.f32 0.0, %v545
  %v547 = vpop.f32.mrb[0].mxu0
  %v548 = vpop.f32.mrb[0].mxu0
  %v549 = vadd.f32 0.0, %v548
  %v550 = vpop.f32.mrb[0].mxu0
  %551 = vmatprep.mubr.bf16.mxu0 0
  %552 = vmatmul.mubr.bf16.gmra.mrb[0].mxu0 %v320
  %v553 = vpop.f32.mrb[0].mxu0
  %v554 = vadd.f32 0.0, %v553
  %v555 = vpop.f32.mrb[0].mxu0
  %v556 = vpop.f32.mrb[0].mxu0
  %v557 = vadd.f32 0.0, %v556
  %v558 = vpop.f32.mrb[0].mxu0
  %559 = vmatprep.mubr.bf16.mxu0 0
  %560 = vmatmul.mubr.bf16.gmra.mrb[0].mxu0 %v323
  %v561 = vpop.f32.mrb[0].mxu0
  %v562 = vadd.f32 0.0, %v561
  %v563 = vpop.f32.mrb[0].mxu0
  %v564 = vpop.f32.mrb[0].mxu0
  %v565 = vadd.f32 0.0, %v564
  %v566 = vpop.f32.mrb[0].mxu0
  %567 = vmatprep.mubr.bf16.mxu0 0
  %568 = vmatmul.mubr.bf16.gmra.mrb[0].mxu0 %v326
  %v569 = vpop.f32.mrb[0].mxu0
  %v570 = vadd.f32 0.0, %v569
  %v571 = vpop.f32.mrb[0].mxu0
  %v572 = vpop.f32.mrb[0].mxu0
  %v573 = vadd.f32 0.0, %v572
  %v574 = vpop.f32.mrb[0].mxu0
  %575 = vmatprep.mubr.bf16.mxu0 0
  %576 = vmatmul.mubr.bf16.gmra.mrb[0].mxu0 %v329
  %v577 = vpop.f32.mrb[0].mxu0
  %v578 = vadd.f32 0.0, %v577
  %v579 = vpop.f32.mrb[0].mxu0
  %v580 = vpop.f32.mrb[0].mxu0
  %v581 = vadd.f32 0.0, %v580
  %v582 = vpop.f32.mrb[0].mxu0
  %583 = vmatprep.mubr.bf16.mxu0 0
  %584 = vmatmul.mubr.bf16.gmra.mrb[0].mxu0 %v332
  %v585 = vpop.f32.mrb[0].mxu0
  %v586 = vadd.f32 0.0, %v585
  %v587 = vpop.f32.mrb[0].mxu0
  %v588 = vpop.f32.mrb[0].mxu0
  %v589 = vadd.f32 0.0, %v588
  %v590 = vpop.f32.mrb[0].mxu0
  %591 = vmatprep.mubr.bf16.mxu0 0
  %592 = vmatmul.mubr.bf16.gmra.mrb[0].mxu0 %v335
  %v593 = vpop.f32.mrb[0].mxu0
  %v594 = vadd.f32 0.0, %v593
  %v595 = vpop.f32.mrb[0].mxu0
  %v596 = vpop.f32.mrb[0].mxu0
  %v597 = vadd.f32 0.0, %v596
  %v598 = vpop.f32.mrb[0].mxu0
  %599 = vmatprep.mubr.bf16.mxu0 0
  %600 = vmatmul.mubr.bf16.gmra.mrb[0].mxu0 %v338
  %v601 = vpop.f32.mrb[0].mxu0
  %v602 = vadd.f32 0.0, %v601
  %v603 = vpop.f32.mrb[0].mxu0
  %v604 = vpop.f32.mrb[0].mxu0
  %v605 = vadd.f32 0.0, %v604
  %v606 = vpop.f32.mrb[0].mxu0
  %607 = vmatprep.mubr.bf16.mxu0 0
  %608 = vmatmul.mubr.bf16.gmra.mrb[0].mxu0 %v341
  %v609 = vpop.f32.mrb[0].mxu0
  %v610 = vadd.f32 0.0, %v609
  %v611 = vpop.f32.mrb[0].mxu0
  %v612 = vpop.f32.mrb[0].mxu0
  %v613 = vadd.f32 0.0, %v612
  %v614 = vpop.f32.mrb[0].mxu0
  %615 = vmatprep.mubr.bf16.mxu0 0
  %616 = vmatmul.mubr.bf16.gmra.mrb[0].mxu0 %v344
  %v617 = vpop.f32.mrb[0].mxu0
  %v618 = vadd.f32 0.0, %v617
  %v619 = vpop.f32.mrb[0].mxu0
  %v620 = vpop.f32.mrb[0].mxu0
  %v621 = vadd.f32 0.0, %v620
  %v622 = vpop.f32.mrb[0].mxu0
  %623 = vmatprep.mubr.bf16.mxu0 0
  %624 = vmatmul.mubr.bf16.gmra.mrb[0].mxu0 %v347
  %v625 = vpop.f32.mrb[0].mxu0
  %v626 = vadd.f32 0.0, %v625
  %v627 = vpop.f32.mrb[0].mxu0
  %v628 = vpop.f32.mrb[0].mxu0
  %v629 = vadd.f32 0.0, %v628
  %v630 = vpop.f32.mrb[0].mxu0
  %631 = vmatprep.mubr.bf16.mxu0 0
  %632 = vmatmul.mubr.bf16.gmra.mrb[0].mxu0 %v350
  %v633 = vpop.f32.mrb[0].mxu0
  %v634 = vadd.f32 0.0, %v633
  %v635 = vpop.f32.mrb[0].mxu0
  %v636 = vpop.f32.mrb[0].mxu0
  %v637 = vadd.f32 0.0, %v636
  %v638 = vpop.f32.mrb[0].mxu0
  %639 = vmatprep.mubr.bf16.mxu0 0
  %640 = vmatmul.mubr.bf16.gmra.mrb[0].mxu0 %v353
  %v641 = vpop.f32.mrb[0].mxu0
  %v642 = vadd.f32 0.0, %v641
  %v643 = vpop.f32.mrb[0].mxu0
  %v644 = vpop.f32.mrb[0].mxu0
  %v645 = vadd.f32 0.0, %v644
  %v646 = vpop.f32.mrb[0].mxu0
  %647 = vdwg.mxu0
  %648 = vst [vmem:[%s2] sm:$0xff] %v394
  %649 = vst [vmem:[%s2 + $0x8] sm:$0xff] %v397
  %650 = vst [vmem:[%s2 + $0x10] sm:$0xff] %v402
  %651 = vst [vmem:[%s2 + $0x18] sm:$0xff] %v405
  %652 = vst [vmem:[%s2 + $0x20] sm:$0xff] %v410
  %653 = vst [vmem:[%s2 + $0x28] sm:$0xff] %v413
  %654 = vst [vmem:[%s2 + $0x30] sm:$0xff] %v418
  %655 = vst [vmem:[%s2 + $0x38] sm:$0xff] %v421
  %656 = vst [vmem:[%s2 + $0x40] sm:$0xff] %v426
  %657 = vst [vmem:[%s2 + $0x48] sm:$0xff] %v429
  %658 = vst [vmem:[%s2 + $0x50] sm:$0xff] %v434
  %659 = vst [vmem:[%s2 + $0x58] sm:$0xff] %v437
  %660 = vst [vmem:[%s2 + $0x60] sm:$0xff] %v442
  %661 = vst [vmem:[%s2 + $0x68] sm:$0xff] %v445
  %662 = vst [vmem:[%s2 + $0x70] sm:$0xff] %v450
  %663 = vst [vmem:[%s2 + $0x78] sm:$0xff] %v453
  %664 = vst [vmem:[%s2 + $0x80] sm:$0xff] %v458
  %665 = vst [vmem:[%s2 + $0x88] sm:$0xff] %v461
  %666 = vst [vmem:[%s2 + $0x90] sm:$0xff] %v466
  %667 = vst [vmem:[%s2 + $0x98] sm:$0xff] %v469
  %668 = vst [vmem:[%s2 + $0xa0] sm:$0xff] %v474
  %669 = vst [vmem:[%s2 + $0xa8] sm:$0xff] %v477
  %670 = vst [vmem:[%s2 + $0xb0] sm:$0xff] %v482
  %671 = vst [vmem:[%s2 + $0xb8] sm:$0xff] %v485
  %672 = vst [vmem:[%s2 + $0xc0] sm:$0xff] %v490
  %673 = vst [vmem:[%s2 + $0xc8] sm:$0xff] %v493
  %674 = vst [vmem:[%s2 + $0xd0] sm:$0xff] %v498
  %675 = vst [vmem:[%s2 + $0xd8] sm:$0xff] %v501
  %676 = vst [vmem:[%s2 + $0xe0] sm:$0xff] %v506
  %677 = vst [vmem:[%s2 + $0xe8] sm:$0xff] %v509
  %678 = vst [vmem:[%s2 + $0xf0] sm:$0xff] %v514
  %679 = vst [vmem:[%s2 + $0xf8] sm:$0xff] %v517
  %680 = vst [vmem:[%s2 + $0x100] sm:$0xff] %v522
  %681 = vst [vmem:[%s2 + $0x108] sm:$0xff] %v525
  %682 = vst [vmem:[%s2 + $0x110] sm:$0xff] %v530
  %683 = vst [vmem:[%s2 + $0x118] sm:$0xff] %v533
  %684 = vst [vmem:[%s2 + $0x120] sm:$0xff] %v538
  %685 = vst [vmem:[%s2 + $0x128] sm:$0xff] %v541
  %686 = vst [vmem:[%s2 + $0x130] sm:$0xff] %v546
  %687 = vst [vmem:[%s2 + $0x138] sm:$0xff] %v549
  %688 = vst [vmem:[%s2 + $0x140] sm:$0xff] %v554
  %689 = vst [vmem:[%s2 + $0x148] sm:$0xff] %v557
  %690 = vst [vmem:[%s2 + $0x150] sm:$0xff] %v562
  %691 = vst [vmem:[%s2 + $0x158] sm:$0xff] %v565
  %692 = vst [vmem:[%s2 + $0x160] sm:$0xff] %v570
  %693 = vst [vmem:[%s2 + $0x168] sm:$0xff] %v573
  %694 = vst [vmem:[%s2 + $0x170] sm:$0xff] %v578
  %695 = vst [vmem:[%s2 + $0x178] sm:$0xff] %v581
  %696 = vst [vmem:[%s2 + $0x180] sm:$0xff] %v586
  %697 = vst [vmem:[%s2 + $0x188] sm:$0xff] %v589
  %698 = vst [vmem:[%s2 + $0x190] sm:$0xff] %v594
  %699 = vst [vmem:[%s2 + $0x198] sm:$0xff] %v597
  %700 = vst [vmem:[%s2 + $0x1a0] sm:$0xff] %v602
  %701 = vst [vmem:[%s2 + $0x1a8] sm:$0xff] %v605
  %702 = vst [vmem:[%s2 + $0x1b0] sm:$0xff] %v610
  %703 = vst [vmem:[%s2 + $0x1b8] sm:$0xff] %v613
  %704 = vst [vmem:[%s2 + $0x1c0] sm:$0xff] %v618
  %705 = vst [vmem:[%s2 + $0x1c8] sm:$0xff] %v621
  %706 = vst [vmem:[%s2 + $0x1d0] sm:$0xff] %v626
  %707 = vst [vmem:[%s2 + $0x1d8] sm:$0xff] %v629
  %708 = vst [vmem:[%s2 + $0x1e0] sm:$0xff] %v634
  %709 = vst [vmem:[%s2 + $0x1e8] sm:$0xff] %v637
  %710 = vst [vmem:[%s2 + $0x1f0] sm:$0xff] %v642
  %711 = vst [vmem:[%s2 + $0x1f8] sm:$0xff] %v645
  %v712 = vadd.f32 %v394, %v397
  %v713 = vadd.f32 %v712, %v402
  %v714 = vadd.f32 %v713, %v405
  %v715 = vadd.f32 %v714, %v410
  %v716 = vadd.f32 %v715, %v413
  %v717 = vadd.f32 %v716, %v418
  %v718 = vadd.f32 %v717, %v421
  %v719 = vadd.f32 %v718, %v426
  %v720 = vadd.f32 %v719, %v429
  %v721 = vadd.f32 %v720, %v434
  %v722 = vadd.f32 %v721, %v437
  %v723 = vadd.f32 %v722, %v442
  %v724 = vadd.f32 %v723, %v445
  %v725 = vadd.f32 %v724, %v450
  %v726 = vadd.f32 %v725, %v453
  %v727 = vadd.f32 %v726, %v458
  %v728 = vadd.f32 %v727, %v461
  %v729 = vadd.f32 %v728, %v466
  %v730 = vadd.f32 %v729, %v469
  %v731 = vadd.f32 %v730, %v474
  %v732 = vadd.f32 %v731, %v477
  %v733 = vadd.f32 %v732, %v482
  %v734 = vadd.f32 %v733, %v485
  %v735 = vadd.f32 %v734, %v490
  %v736 = vadd.f32 %v735, %v493
  %v737 = vadd.f32 %v736, %v498
  %v738 = vadd.f32 %v737, %v501
  %v739 = vadd.f32 %v738, %v506
  %v740 = vadd.f32 %v739, %v509
  %v741 = vadd.f32 %v740, %v514
  %v742 = vadd.f32 %v741, %v517
  %v743 = vadd.f32 %v742, %v522
  %v744 = vadd.f32 %v743, %v525
  %v745 = vadd.f32 %v744, %v530
  %v746 = vadd.f32 %v745, %v533
  %v747 = vadd.f32 %v746, %v538
  %v748 = vadd.f32 %v747, %v541
  %v749 = vadd.f32 %v748, %v546
  %v750 = vadd.f32 %v749, %v549
  %v751 = vadd.f32 %v750, %v554
  %v752 = vadd.f32 %v751, %v557
  %v753 = vadd.f32 %v752, %v562
  %v754 = vadd.f32 %v753, %v565
  %v755 = vadd.f32 %v754, %v570
  %v756 = vadd.f32 %v755, %v573
  %v757 = vadd.f32 %v756, %v578
  %v758 = vadd.f32 %v757, %v581
  %v759 = vadd.f32 %v758, %v586
  %v760 = vadd.f32 %v759, %v589
  %v761 = vadd.f32 %v760, %v594
  %v762 = vadd.f32 %v761, %v597
  %v763 = vadd.f32 %v762, %v602
  %v764 = vadd.f32 %v763, %v605
  %v765 = vadd.f32 %v764, %v610
  %v766 = vadd.f32 %v765, %v613
  %v767 = vadd.f32 %v766, %v618
  %v768 = vadd.f32 %v767, %v621
  %v769 = vadd.f32 %v768, %v626
  %v770 = vadd.f32 %v769, %v629
  %v771 = vadd.f32 %v770, %v634
  %v772 = vadd.f32 %v771, %v637
  %v773 = vadd.f32 %v772, %v642
  %v774 = vadd.f32 %v773, %v645
  %v775 = vrot.slane %v774, 4
  %v776 = vadd.f32 %v774, %v775
  %v777 = vrot.slane %v776, 2
  %v778 = vadd.f32 %v776, %v777
  %v779 = vrot.slane %v778, 1
  %v780 = vadd.f32 %v778, %v779
  %v781 = vmul.f32 %v394, %v394
  %v782 = vmul.f32 %v397, %v397
  %v783 = vmul.f32 %v402, %v402
  %v784 = vmul.f32 %v405, %v405
  %v785 = vmul.f32 %v410, %v410
  %v786 = vmul.f32 %v413, %v413
  %v787 = vmul.f32 %v418, %v418
  %v788 = vmul.f32 %v421, %v421
  %v789 = vmul.f32 %v426, %v426
  %v790 = vmul.f32 %v429, %v429
  %v791 = vmul.f32 %v434, %v434
  %v792 = vmul.f32 %v437, %v437
  %v793 = vmul.f32 %v442, %v442
  %v794 = vmul.f32 %v445, %v445
  %v795 = vmul.f32 %v450, %v450
  %v796 = vmul.f32 %v453, %v453
  %v797 = vmul.f32 %v458, %v458
  %v798 = vmul.f32 %v461, %v461
  %v799 = vmul.f32 %v466, %v466
  %v800 = vmul.f32 %v469, %v469
  %v801 = vmul.f32 %v474, %v474
  %v802 = vmul.f32 %v477, %v477
  %v803 = vmul.f32 %v482, %v482
  %v804 = vmul.f32 %v485, %v485
  %v805 = vmul.f32 %v490, %v490
  %v806 = vmul.f32 %v493, %v493
  %v807 = vmul.f32 %v498, %v498
  %v808 = vmul.f32 %v501, %v501
  %v809 = vmul.f32 %v506, %v506
  %v810 = vmul.f32 %v509, %v509
  %v811 = vmul.f32 %v514, %v514
  %v812 = vmul.f32 %v517, %v517
  %v813 = vmul.f32 %v522, %v522
  %v814 = vmul.f32 %v525, %v525
  %v815 = vmul.f32 %v530, %v530
  %v816 = vmul.f32 %v533, %v533
  %v817 = vmul.f32 %v538, %v538
  %v818 = vmul.f32 %v541, %v541
  %v819 = vmul.f32 %v546, %v546
  %v820 = vmul.f32 %v549, %v549
  %v821 = vmul.f32 %v554, %v554
  %v822 = vmul.f32 %v557, %v557
  %v823 = vmul.f32 %v562, %v562
  %v824 = vmul.f32 %v565, %v565
  %v825 = vmul.f32 %v570, %v570
  %v826 = vmul.f32 %v573, %v573
  %v827 = vmul.f32 %v578, %v578
  %v828 = vmul.f32 %v581, %v581
  %v829 = vmul.f32 %v586, %v586
  %v830 = vmul.f32 %v589, %v589
  %v831 = vmul.f32 %v594, %v594
  %v832 = vmul.f32 %v597, %v597
  %v833 = vmul.f32 %v602, %v602
  %v834 = vmul.f32 %v605, %v605
  %v835 = vmul.f32 %v610, %v610
  %v836 = vmul.f32 %v613, %v613
  %v837 = vmul.f32 %v618, %v618
  %v838 = vmul.f32 %v621, %v621
  %v839 = vmul.f32 %v626, %v626
  %v840 = vmul.f32 %v629, %v629
  %v841 = vmul.f32 %v634, %v634
  %v842 = vmul.f32 %v637, %v637
  %v843 = vmul.f32 %v642, %v642
  %v844 = vmul.f32 %v645, %v645
  %v845 = vadd.f32 %v781, %v782
  %v846 = vadd.f32 %v845, %v783
  %v847 = vadd.f32 %v846, %v784
  %v848 = vadd.f32 %v847, %v785
  %v849 = vadd.f32 %v848, %v786
  %v850 = vadd.f32 %v849, %v787
  %v851 = vadd.f32 %v850, %v788
  %v852 = vadd.f32 %v851, %v789
  %v853 = vadd.f32 %v852, %v790
  %v854 = vadd.f32 %v853, %v791
  %v855 = vadd.f32 %v854, %v792
  %v856 = vadd.f32 %v855, %v793
  %v857 = vadd.f32 %v856, %v794
  %v858 = vadd.f32 %v857, %v795
  %v859 = vadd.f32 %v858, %v796
  %v860 = vadd.f32 %v859, %v797
  %v861 = vadd.f32 %v860, %v798
  %v862 = vadd.f32 %v861, %v799
  %v863 = vadd.f32 %v862, %v800
  %v864 = vadd.f32 %v863, %v801
  %v865 = vadd.f32 %v864, %v802
  %v866 = vadd.f32 %v865, %v803
  %v867 = vadd.f32 %v866, %v804
  %v868 = vadd.f32 %v867, %v805
  %v869 = vadd.f32 %v868, %v806
  %v870 = vadd.f32 %v869, %v807
  %v871 = vadd.f32 %v870, %v808
  %v872 = vadd.f32 %v871, %v809
  %v873 = vadd.f32 %v872, %v810
  %v874 = vadd.f32 %v873, %v811
  %v875 = vadd.f32 %v874, %v812
  %v876 = vadd.f32 %v875, %v813
  %v877 = vadd.f32 %v876, %v814
  %v878 = vadd.f32 %v877, %v815
  %v879 = vadd.f32 %v878, %v816
  %v880 = vadd.f32 %v879, %v817
  %v881 = vadd.f32 %v880, %v818
  %v882 = vadd.f32 %v881, %v819
  %v883 = vadd.f32 %v882, %v820
  %v884 = vadd.f32 %v883, %v821
  %v885 = vadd.f32 %v884, %v822
  %v886 = vadd.f32 %v885, %v823
  %v887 = vadd.f32 %v886, %v824
  %v888 = vadd.f32 %v887, %v825
  %v889 = vadd.f32 %v888, %v826
  %v890 = vadd.f32 %v889, %v827
  %v891 = vadd.f32 %v890, %v828
  %v892 = vadd.f32 %v891, %v829
  %v893 = vadd.f32 %v892, %v830
  %v894 = vadd.f32 %v893, %v831
  %v895 = vadd.f32 %v894, %v832
  %v896 = vadd.f32 %v895, %v833
  %v897 = vadd.f32 %v896, %v834
  %v898 = vadd.f32 %v897, %v835
  %v899 = vadd.f32 %v898, %v836
  %v900 = vadd.f32 %v899, %v837
  %v901 = vadd.f32 %v900, %v838
  %v902 = vadd.f32 %v901, %v839
  %v903 = vadd.f32 %v902, %v840
  %v904 = vadd.f32 %v903, %v841
  %v905 = vadd.f32 %v904, %v842
  %v906 = vadd.f32 %v905, %v843
  %v907 = vadd.f32 %v906, %v844
  %v908 = vrot.slane %v907, 4
  %v909 = vadd.f32 %v907, %v908
  %v910 = vrot.slane %v909, 2
  %v911 = vadd.f32 %v909, %v910
  %v912 = vrot.slane %v911, 1
  %v913 = vadd.f32 %v911, %v912
  %v914 = vlaneseq
  %v915 = vshrl.u32 %v914, 7
  %vm916 = vcmp.eq.s32.totalorder %v915, 0
  %v917 = vsel %vm916, %v780, 0.0
  %vm918 = vcmp.eq.s32.totalorder %v915, 1
  %v919 = vsel %vm918, %v913, 0.0
  %v920 = vadd.f32 %v917, %v919
  %921 = vst [vmem:[%s3] sm:$0xff] %v920
  // Predicated region
  $region10: #{conv_bn_scale4rec.2} parent=0 // pred_check
    _
  $region11: #{conv_bn_scale4rec.2} parent=0 // pred_check_branch
    %923 = sbr.rel (0) target = $region13
  $region12: #{conv_bn_scale4rec.2} parent=0 // pred_region
    _
  $region13: #{conv_bn_scale4rec.2} parent=0 // pred_fallthru
    _
  // Predicated region
  $region14: #{conv_bn_scale4rec.2} parent=0 // pred_check
    _
  $region15: #{conv_bn_scale4rec.2} parent=0 // pred_check_branch
    %925 = sbr.rel (0) target = $region17
  $region16: #{conv_bn_scale4rec.2} parent=0 // pred_region
    _
  $region17: #{conv_bn_scale4rec.2} parent=0 // pred_fallthru
    _
  // Predicated region
  $region18: #{conv_bn_scale4rec.2} parent=0 // pred_check
    _
  $region19: #{conv_bn_scale4rec.2} parent=0 // pred_check_branch
    %927 = sbr.rel (0) target = $region21
  $region20: #{conv_bn_scale4rec.2} parent=0 // pred_region
    _
  $region21: #{conv_bn_scale4rec.2} parent=0 // pred_fallthru
    _
  // Predicated region
  $region22: #{conv_bn_scale4rec.2} parent=0 // pred_check
    _
  $region23: #{conv_bn_scale4rec.2} parent=0 // pred_check_branch
    %929 = sbr.rel (0) target = $region25
  $region24: #{conv_bn_scale4rec.2} parent=0 // pred_region
    _
  $region25: #{conv_bn_scale4rec.2} parent=0 // pred_fallthru
    _

</llo_original>
